<compile_context>
chip_gen: v5e
topology: v5e:2x2
jax: 0.10.0
libtpu: 0.0.40
codegen_flags: <defaults>
</compile_context>

<pallas_src>
import jax
import jax.numpy as jnp
from jax.experimental import pallas as pl
from jax.experimental.pallas import tpu as pltpu


# --------------------------------------------------------------------------
# Kernel A: lane-packed / generic path.
#   x_ref: (TM, G) f32      -- G consecutive positions per packed output row
#   f_ref: (G, W)  f32      -- per-group masked frequencies (W = G * C)
#   m_ref: (1, W)  f32      -- 1.0 on sin lanes, 0.0 on cos lanes
#   o_ref: (TM, W) out_dtype
# --------------------------------------------------------------------------
def _select_kernel(x_ref, f_ref, m_ref, o_ref):
    g_count = f_ref.shape[0]
    # phase[t, l] = x[t, l // C] * freq[(l % C) % half]; the masked-frequency
    # rows make this a sum of broadcast multiplies (pure VPU, no MXU).
    acc = x_ref[:, 0:1] * f_ref[0:1, :]
    for g in range(1, g_count):          # static unrolled loop, G is small
        acc = acc + x_ref[:, g:g + 1] * f_ref[g:g + 1, :]
    out = jnp.where(m_ref[...] > 0.5, jnp.sin(acc), jnp.cos(acc))
    o_ref[...] = out.astype(o_ref.dtype)   # single full-width (lane-dense) store


# --------------------------------------------------------------------------
# Kernel B: large-C path (half % 128 == 0) -- both slice stores lane-aligned,
# one transcendental per element.
#   x_ref: (TM, 1) f32, f_ref: (1, half) f32, o_ref: (TM, C) out_dtype
# --------------------------------------------------------------------------
def _split_kernel(x_ref, f_ref, o_ref):
    half = f_ref.shape[1]
    ph = x_ref[...] * f_ref[...]                    # (TM, half) f32
    o_ref[:, :half] = jnp.cos(ph).astype(o_ref.dtype)
    o_ref[:, half:] = jnp.sin(ph).astype(o_ref.dtype)


def _pick_tm(nrows, lane_width, bytes_per_elem=4,
             tile_budget_bytes=4 << 20, cap=1024):
    """Largest row tile keeping the double-buffered output block well inside
    the scoped-VMEM budget (incl. v7x's smaller 64 MiB VMEM)."""
    tm = min(cap, max(8, tile_budget_bytes // max(1, lane_width * bytes_per_elem)))
    tm = max(8, (tm // 8) * 8)
    if nrows <= tm:
        return nrows        # full extent -> always a legal block shape
    return tm


def _pos_emb_select(xf, f_base, num_channels, group, out_dtype):
    n = xf.shape[0]
    half = num_channels // 2
    w = group * num_channels
    nrows = n // group

    # Wrapper-side (tiny, O(W)) constant tables.
    lane = jnp.arange(w)
    c = lane % num_channels
    freq_lane = f_base[c % half]                                    # (W,)
    grp = lane // num_channels                                      # (W,)
    f_sel = jnp.where(grp[None, :] == jnp.arange(group)[:, None],
                      freq_lane[None, :], 0.0).astype(jnp.float32)  # (G, W)
    sin_mask = (c >= half).astype(jnp.float32)[None, :]             # (1, W)

    x2d = xf.reshape(nrows, group)     # free: row-major view of the positions
    tm = _pick_tm(nrows, w)
    grid = (pl.cdiv(nrows, tm),)

    out = pl.pallas_call(
        _select_kernel,
        out_shape=jax.ShapeDtypeStruct((nrows, w), out_dtype),
        grid=grid,
        in_specs=[
            pl.BlockSpec((tm, group), lambda i: (i, 0)),
            pl.BlockSpec((group, w), lambda i: (0, 0)),
            pl.BlockSpec((1, w), lambda i: (0, 0)),
        ],
        out_specs=pl.BlockSpec((tm, w), lambda i: (i, 0)),
        compiler_params=pltpu.CompilerParams(
            dimension_semantics=("parallel",)),
    )(x2d, f_sel, sin_mask)
    # (nrows, G*C) and (N, C) share the same row-major bytes -> free reshape.
    return out.reshape(n, num_channels)


def _pos_emb_split(xf, f_base, num_channels, out_dtype):
    n = xf.shape[0]
    half = num_channels // 2
    x2d = xf.reshape(n, 1)
    f_row = f_base.reshape(1, half)
    tm = _pick_tm(n, num_channels)
    grid = (pl.cdiv(n, tm),)

    return pl.pallas_call(
        _split_kernel,
        out_shape=jax.ShapeDtypeStruct((n, num_channels), out_dtype),
        grid=grid,
        in_specs=[
            pl.BlockSpec((tm, 1), lambda i: (i, 0)),
            pl.BlockSpec((1, half), lambda i: (0, 0)),
        ],
        out_specs=pl.BlockSpec((tm, num_channels), lambda i: (i, 0)),
        compiler_params=pltpu.CompilerParams(
            dimension_semantics=("parallel",)),
    )(x2d, f_row)


def positional_embedding(x, num_channels, max_positions=10000):
    """x: (N,) positions -> (N, num_channels) sinusoidal embedding (x.dtype)."""
    assert num_channels % 2 == 0
    half = num_channels // 2
    n = x.shape[0]
    out_dtype = x.dtype

    # Buffer setup (matches torch.linspace(0, 0.5, C//2)); kept in f32 so the
    # phase/trig math is always done in f32 regardless of input dtype.
    f_base = (1.0 / max_positions) ** jnp.linspace(0.0, 0.5, half,
                                                   dtype=jnp.float32)
    xf = x.astype(jnp.float32)

    if half % 128 == 0:
        # cos/sin halves are already 128-lane aligned: one trig per element.
        return _pos_emb_split(xf, f_base, num_channels, out_dtype)

    # Small/odd C: pack G = 128 // C positions per output row when possible so
    # every store is a full 128-lane store; otherwise fall back to G = 1.
    if (num_channels < 128 and 128 % num_channels == 0
            and (128 // num_channels) <= 16
            and n % (128 // num_channels) == 0):
        group = 128 // num_channels
    else:
        group = 1
    return _pos_emb_select(xf, f_base, num_channels, group, out_dtype)


if __name__ == "__main__":
    key = jax.random.PRNGKey(0)
    N = 8                      # e.g. a batch of 8 diffusion timesteps
    # Deterministic example positions (like noise-level / timestep scalars).
    x = jax.random.uniform(key, (N,), dtype=jnp.float32) * 1000.0

    for C in (32, 256):        # 32 -> lane-packed path, 256 -> aligned split path
        out = positional_embedding(x, num_channels=C, max_positions=10000)
        out = jax.block_until_ready(out)

        # Reference in plain JAX (same math as the PyTorch forward).
        freqs = (1.0 / 10000) ** jnp.linspace(0.0, 0.5, C // 2,
                                              dtype=jnp.float32)
        phases = jnp.outer(x, freqs)
        ref = jnp.concatenate([jnp.cos(phases), jnp.sin(phases)], axis=1)
        assert out.shape == (N, C)
        assert jnp.allclose(out, ref, atol=1e-5, rtol=1e-5), f"mismatch at C={C}"

    print("KERNEL_OK")
</pallas_src>

<mosaic_0001>
module attributes {stable_mosaic.version = 11 : i64} {
  func.func @_select_kernel(%arg0: i32, %arg1: memref<2x4xf32, #tpu.memory_space<vmem>>, %arg2: memref<4x128xf32, #tpu.memory_space<vmem>>, %arg3: memref<1x128xf32, #tpu.memory_space<vmem>>, %arg4: memref<2x128xf32, #tpu.memory_space<vmem>>) attributes {dimension_semantics = [#tpu.dimension_semantics<parallel>], iteration_bounds = array<i64: 1>, scalar_prefetch = 0 : i64, scratch_operands = 0 : i64, tpu.core_type = #tpu.core_type<tc>, window_params = [{transform_indices = @transform_0, window_bounds = array<i64: 2, 4>}, {pipeline_mode = #tpu.pipeline_mode<synchronous>, transform_indices = @transform_1, window_bounds = array<i64: 4, 128>}, {pipeline_mode = #tpu.pipeline_mode<synchronous>, transform_indices = @transform_2, window_bounds = array<i64: 1, 128>}, {transform_indices = @transform_3, window_bounds = array<i64: 2, 128>}]} {
    %c0 = arith.constant 0 : index
    %c0_0 = arith.constant 0 : index
    %0 = vector.load %arg1[%c0, %c0_0] : memref<2x4xf32, #tpu.memory_space<vmem>>, vector<2x1xf32>
    %c0_1 = arith.constant 0 : index
    %c0_2 = arith.constant 0 : index
    %1 = vector.load %arg2[%c0_1, %c0_2] : memref<4x128xf32, #tpu.memory_space<vmem>>, vector<1x128xf32>
    %2 = vector.broadcast %0 : vector<2x1xf32> to vector<2x128xf32>
    %3 = vector.broadcast %1 : vector<1x128xf32> to vector<2x128xf32>
    %4 = arith.mulf %2, %3 : vector<2x128xf32>
    %c0_3 = arith.constant 0 : index
    %c1 = arith.constant 1 : index
    %5 = vector.load %arg1[%c0_3, %c1] : memref<2x4xf32, #tpu.memory_space<vmem>>, vector<2x1xf32>
    %c1_4 = arith.constant 1 : index
    %c0_5 = arith.constant 0 : index
    %6 = vector.load %arg2[%c1_4, %c0_5] : memref<4x128xf32, #tpu.memory_space<vmem>>, vector<1x128xf32>
    %7 = vector.broadcast %5 : vector<2x1xf32> to vector<2x128xf32>
    %8 = vector.broadcast %6 : vector<1x128xf32> to vector<2x128xf32>
    %9 = arith.mulf %7, %8 : vector<2x128xf32>
    %10 = arith.addf %4, %9 : vector<2x128xf32>
    %c0_6 = arith.constant 0 : index
    %c2 = arith.constant 2 : index
    %11 = vector.load %arg1[%c0_6, %c2] : memref<2x4xf32, #tpu.memory_space<vmem>>, vector<2x1xf32>
    %c2_7 = arith.constant 2 : index
    %c0_8 = arith.constant 0 : index
    %12 = vector.load %arg2[%c2_7, %c0_8] : memref<4x128xf32, #tpu.memory_space<vmem>>, vector<1x128xf32>
    %13 = vector.broadcast %11 : vector<2x1xf32> to vector<2x128xf32>
    %14 = vector.broadcast %12 : vector<1x128xf32> to vector<2x128xf32>
    %15 = arith.mulf %13, %14 : vector<2x128xf32>
    %16 = arith.addf %10, %15 : vector<2x128xf32>
    %c0_9 = arith.constant 0 : index
    %c3 = arith.constant 3 : index
    %17 = vector.load %arg1[%c0_9, %c3] : memref<2x4xf32, #tpu.memory_space<vmem>>, vector<2x1xf32>
    %c3_10 = arith.constant 3 : index
    %c0_11 = arith.constant 0 : index
    %18 = vector.load %arg2[%c3_10, %c0_11] : memref<4x128xf32, #tpu.memory_space<vmem>>, vector<1x128xf32>
    %19 = vector.broadcast %17 : vector<2x1xf32> to vector<2x128xf32>
    %20 = vector.broadcast %18 : vector<1x128xf32> to vector<2x128xf32>
    %21 = arith.mulf %19, %20 : vector<2x128xf32>
    %22 = arith.addf %16, %21 : vector<2x128xf32>
    %c0_12 = arith.constant 0 : index
    %c0_13 = arith.constant 0 : index
    %23 = vector.load %arg3[%c0_12, %c0_13] : memref<1x128xf32, #tpu.memory_space<vmem>>, vector<1x128xf32>
    %cst = arith.constant 5.000000e-01 : f32
    %24 = vector.broadcast %cst : f32 to vector<1x128xf32>
    %25 = arith.cmpf ogt, %23, %24 : vector<1x128xf32>
    %26 = math.sin %22 : vector<2x128xf32>
    %27 = math.cos %22 : vector<2x128xf32>
    %28 = vector.shape_cast %25 : vector<1x128xi1> to vector<1x128xi1>
    %29 = vector.broadcast %28 : vector<1x128xi1> to vector<2x128xi1>
    %30 = arith.select %29, %26, %27 : vector<2x128xi1>, vector<2x128xf32>
    %c0_14 = arith.constant 0 : index
    %c0_15 = arith.constant 0 : index
    %31 = vector.load %arg4[%c0_14, %c0_15] : memref<2x128xf32, #tpu.memory_space<vmem>>, vector<2x128xf32>
    tpu.vector_store %arg4[%c0_14, %c0_15], %30 {strides = array<i32>} : memref<2x128xf32, #tpu.memory_space<vmem>>, vector<2x128xf32>,
    return
  }
  func.func @transform_0(%arg0: i32) -> (i32, i32) {
    %c0_i32 = arith.constant 0 : i32
    %c0_i32_0 = arith.constant 0 : i32
    return %arg0, %c0_i32 : i32, i32
  }
  func.func @transform_1(%arg0: i32) -> (i32, i32) {
    %c0_i32 = arith.constant 0 : i32
    %c0_i32_0 = arith.constant 0 : i32
    %c0_i32_1 = arith.constant 0 : i32
    return %c0_i32, %c0_i32_0 : i32, i32
  }
  func.func @transform_2(%arg0: i32) -> (i32, i32) {
    %c0_i32 = arith.constant 0 : i32
    %c0_i32_0 = arith.constant 0 : i32
    %c0_i32_1 = arith.constant 0 : i32
    return %c0_i32, %c0_i32_0 : i32, i32
  }
  func.func @transform_3(%arg0: i32) -> (i32, i32) {
    %c0_i32 = arith.constant 0 : i32
    %c0_i32_0 = arith.constant 0 : i32
    return %arg0, %c0_i32 : i32, i32
  }
}

</mosaic_0001>

<llo_original>
// kernel: tpu_custom_call.1
$region0: #{tpu_custom_call.1}
  #allocation0 [shape = 'u32[]', space=smem, size = 0x4, offset = 0x4, fixed_abs, tag = 'smem constant byte address 0x4 - core index']
  #allocation1 [shape = 'u32[72,128]{1,0:T(1,128)}', space=vmem, size = 0x9000, scoped, tag = 'internal scratch']
  %s0 = inlined_call_operand.hbm [shape: f32[2,4], index: 0, kind: input, shape index: {}]
  %s1 = inlined_call_operand.hbm [shape: f32[4,128], index: 1, kind: input, shape index: {}]
  %s2 = inlined_call_operand.vmem [shape: f32[1,128], index: 2, kind: input, shape index: {}]
  %s3 = inlined_call_operand.hbm [shape: f32[2,128], index: 3, kind: output, shape index: {}]
  %s4 = sld [smem:[#allocation0]]
  $region30: #{tpu_custom_call.1} parent=0
    _
  %s6 = ssub.s32 1, %s4
  %s7 = scalar_select 0, %s6, %s4
  $region1: #{tpu_custom_call.1} parent=0
    #allocation2 [shape = 'u8[1024]{0}', space=vmem, size = 0x400, scoped, tag = 'input window, operand 0, single buffered']
    #allocation3 [shape = 's32[1]{0}', space=sflag, size = 0x4, scoped, tag = 'scoped memory for tpu_custom_call.1']
    #allocation4 [shape = 's32[1]{0}', space=sflag, size = 0x4, scoped, tag = 'scoped memory for tpu_custom_call.1']
    #allocation5 [shape = 'u8[2048]{0}', space=vmem, size = 0x800, scoped, tag = 'input window, operand 1, single buffered']
    #allocation6 [shape = 's32[1]{0}', space=sflag, size = 0x4, scoped, tag = 'scoped memory for tpu_custom_call.1']
    #allocation7 [shape = 'u8[1024]{0}', space=vmem, size = 0x400, scoped, tag = 'output window, operand 0, single buffered']
    %8 = vsyncpa [#allocation3], 0
    %9 = vsyncpa [#allocation6], 0
    %10 = vsyncpa [#allocation4], 0
    // Predicated region
    $region2: #{tpu_custom_call.1} parent=1 // pred_check
      _
    $region3: #{tpu_custom_call.1} parent=1 // pred_check_branch
      %12 = sbr.rel (0) target = $region5
    $region4: #{tpu_custom_call.1} parent=1 // pred_region
      %14 = vsyncadd [#allocation3], 0
      %s16 = sshll.u32 %s0, 4
      %s17 = int_to_ptr.hbm [resolvable:$true] %s16
      %s18 = sshll.u32 [#allocation2], 4
      %s19 = int_to_ptr.vmem [resolvable:$true] %s18
      %21 = dma.hbm_to_vmem [thread:$0]  %s17, 32, %s19, [#allocation3]
    $region5: #{tpu_custom_call.1} parent=1 // pred_fallthru
      _
    // Predicated region
    $region6: #{tpu_custom_call.1} parent=1 // pred_check
      _
    $region7: #{tpu_custom_call.1} parent=1 // pred_check_branch
      %23 = sbr.rel (0) target = $region9
    $region8: #{tpu_custom_call.1} parent=1 // pred_region
      %25 = vsyncadd [#allocation6], 0
      %s27 = sshll.u32 %s1, 4
      %s28 = int_to_ptr.hbm [resolvable:$true] %s27
      %s29 = sshll.u32 [#allocation5], 4
      %s30 = int_to_ptr.vmem [resolvable:$true] %s29
      %32 = dma.hbm_to_vmem [thread:$0]  %s28, 64, %s30, [#allocation6]
    $region9: #{tpu_custom_call.1} parent=1 // pred_fallthru
      _
    // Predicated region
    $region10: #{tpu_custom_call.1} parent=1 // pred_check
      _
    $region11: #{tpu_custom_call.1} parent=1 // pred_check_branch
      %34 = sbr.rel (0) target = $region13
    $region12: #{tpu_custom_call.1} parent=1 // pred_region
      _
    $region13: #{tpu_custom_call.1} parent=1 // pred_fallthru
      _
    // Predicated region
    $region14: #{tpu_custom_call.1} parent=1 // pred_check
      _
    $region15: #{tpu_custom_call.1} parent=1 // pred_check_branch
      %36 = sbr.rel (0) target = $region17
    $region16: #{tpu_custom_call.1} parent=1 // pred_region
      %38 = dma.done [#allocation3], 32
    $region17: #{tpu_custom_call.1} parent=1 // pred_fallthru
      _
    // Predicated region
    $region18: #{tpu_custom_call.1} parent=1 // pred_check
      _
    $region19: #{tpu_custom_call.1} parent=1 // pred_check_branch
      %40 = sbr.rel (0) target = $region21
    $region20: #{tpu_custom_call.1} parent=1 // pred_region
      %42 = dma.done [#allocation6], 64
    $region21: #{tpu_custom_call.1} parent=1 // pred_fallthru
      _
    %v43 = vld [vmem:[#allocation2] sm:$0x3]
    %v44 = vld [vmem:[#allocation5] sm:$0x1]
    %46 = vset.pattern.permute.xlu0 0
    %47 = vperm.xlu0 %46, %v43
    %v48 = vpop.permute.xlu0 %47
    %v50 = vperm.slane %v44, 0
    %v51 = vmul.f32 %v48, %v50
    %v52 = vld [vmem:[#allocation5 + $0x1] sm:$0x1]
    %53 = vset.pattern.permute.xlu0 1
    %54 = vperm.xlu0 %53, %v43
    %v55 = vpop.permute.xlu0 %54
    %v57 = vperm.slane %v52, 0
    %v58 = vmul.f32 %v55, %v57
    %v59 = vadd.f32 %v51, %v58
    %v60 = vld [vmem:[#allocation5 + $0x2] sm:$0x1]
    %61 = vset.pattern.permute.xlu0 2
    %62 = vperm.xlu0 %61, %v43
    %v63 = vpop.permute.xlu0 %62
    %v65 = vperm.slane %v60, 0
    %v66 = vmul.f32 %v63, %v65
    %v67 = vadd.f32 %v59, %v66
    %v68 = vld [vmem:[#allocation5 + $0x3] sm:$0x1]
    %69 = vset.pattern.permute.xlu0 3
    %70 = vperm.xlu0 %69, %v43
    %v71 = vpop.permute.xlu0 %70
    %v73 = vperm.slane %v68, 0
    %v74 = vmul.f32 %v71, %v73
    %v75 = vadd.f32 %v67, %v74
    %v76 = vld [vmem:[%s2] sm:$0x1]
    %vm77 = vcmp.gt.f32.partialorder %v76, 0.5
    %v78 = vand.u32 2147483647, %v75
    %vm79 = vcmp.le.f32.partialorder %v78, 0.7853982
    %vm80 = vcmp.lt.s32.totalorder %v75, 0
    %v81 = vand.u32 %v75, 2139095040
    %v82 = vshrl.u32 %v81, 23
    %v83 = vsub.s32 %v82, 127
    %v84 = vand.u32 2147483647, %v75
    %v85 = vand.u32 %v84, 8388607
    %v86 = vor.u32 %v85, 8388608
    %v87 = vsub.s32 0, %v86
    %v88 = vadd.s32 %v83, 1
    %vm89 = vcmp.gt.s32.totalorder %v88, 0
    %v90 = vsel %vm89, %v88, 0
    %v91 = vshrl.u32 %v90, 5
    %v92 = vand.u32 %v90, 31
    %v93 = vsub.s32 32, %v92
    %v94 = vshrl.u32 683565275, %v93
    %v95 = vshll.u32 683565275, %v92
    %v96 = vshrl.u32 2475754826, %v93
    %v97 = vor.u32 %v95, %v96
    %v98 = vshll.u32 2475754826, %v92
    %v99 = vshrl.u32 2131351028, %v93
    %v100 = vor.u32 %v98, %v99
    %v101 = vshll.u32 2131351028, %v92
    %v102 = vshrl.u32 2102212464, %v93
    %v103 = vor.u32 %v101, %v102
    %v104 = vshll.u32 2102212464, %v92
    %v105 = vshrl.u32 920167782, %v93
    %v106 = vor.u32 %v104, %v105
    %v107 = vshll.u32 920167782, %v92
    %v108 = vshrl.u32 1326507024, %v93
    %v109 = vor.u32 %v107, %v108
    %vm110 = vcmp.lt.s32.totalorder %v91, 1
    %vm111 = vcmp.lt.s32.totalorder %v91, 2
    %vm112 = vcmp.lt.s32.totalorder %v91, 3
    %vm113 = vcmp.lt.s32.totalorder %v91, 4
    %v114 = vsel %vm110, %v94, %v97
    %v115 = vsel %vm113, %v103, 2102212464
    %v116 = vsel %vm112, %v100, %v115
    %v117 = vsel %vm111, %v114, %v116
    %v118 = vsel %vm110, %v97, %v100
    %v119 = vsel %vm113, %v106, 920167782
    %v120 = vsel %vm112, %v103, %v119
    %v121 = vsel %vm111, %v118, %v120
    %v122 = vsel %vm110, %v100, %v103
    %v123 = vsel %vm113, %v109, 1326507024
    %v124 = vsel %vm112, %v106, %v123
    %v125 = vsel %vm111, %v122, %v124
    %v126 = vshll.u32 %v86, 8
    %v127 = vand.u32 %v126, 65535
    %v128 = vshrl.u32 %v126, 16
    %v129 = vand.u32 %v125, 65535
    %v130 = vshrl.u32 %v125, 16
    %v131 = vmul.u32 %v127, %v129
    %v132 = vmul.u32 %v127, %v130
    %v133 = vmul.u32 %v128, %v129
    %v134 = vmul.u32 %v128, %v130
    %v135 = vshll.u32 %v132, 16
    %v136 = vshrl.u32 %v132, 16
    %v137 = vshll.u32 %v133, 16
    %v138 = vshrl.u32 %v133, 16
    %vm139 = vc.u32 %v131, %v135
    %v140 = vsel %vm139, 1, 0
    %v141 = vadd.s32 %v131, %v135
    %v142 = vadd.s32 %v134, %v140
    %vm143 = vc.u32 %v141, %v137
    %v144 = vsel %vm143, 1, 0
    %v145 = vadd.s32 %v141, %v137
    %v146 = vadd.s32 %v142, %v144
    %v147 = vadd.s32 %v146, %v136
    %v148 = vadd.s32 %v147, %v138
    %v149 = vand.u32 %v126, 65535
    %v150 = vshrl.u32 %v126, 16
    %v151 = vand.u32 %v121, 65535
    %v152 = vshrl.u32 %v121, 16
    %v153 = vmul.u32 %v149, %v151
    %v154 = vmul.u32 %v149, %v152
    %v155 = vmul.u32 %v150, %v151
    %v156 = vmul.u32 %v150, %v152
    %v157 = vshll.u32 %v154, 16
    %v158 = vshrl.u32 %v154, 16
    %v159 = vshll.u32 %v155, 16
    %v160 = vshrl.u32 %v155, 16
    %vm161 = vc.u32 %v153, %v157
    %v162 = vsel %vm161, 1, 0
    %v163 = vadd.s32 %v153, %v157
    %v164 = vadd.s32 %v156, %v162
    %vm165 = vc.u32 %v163, %v159
    %v166 = vsel %vm165, 1, 0
    %v167 = vadd.s32 %v163, %v159
    %v168 = vadd.s32 %v164, %v166
    %v169 = vadd.s32 %v168, %v158
    %v170 = vadd.s32 %v169, %v160
    %v171 = vmul.u32 %v126, %v117
    %v172 = vadd.s32 %v148, %v167
    %vm173 = vc.u32 %v148, %v167
    %v174 = vadd.s32 %v170, 1
    %v175 = vsel %vm173, %v174, %v170
    %v176 = vadd.s32 %v171, %v175
    %v177 = vadd.s32 %v176, 536870912
    %v178 = vshrl.u32 %v177, 30
    %v179 = vshll.u32 %v178, 30
    %v180 = vsub.s32 %v176, %v179
    %vm181 = vcmp.lt.s32.totalorder %v180, 0
    %v182 = vsub.s32 0, %v180
    %v183 = vsel %vm181, %v182, %v180
    %v184 = vclz %v183
    %v185 = vsub.s32 %v184, 2
    %vm186 = vcmp.gt.s32.totalorder 0, %v185
    %v187 = vsel %vm186, 0, %v185
    %v188 = vsub.s32 32, %v187
    %v189 = vshll.u32 %v180, %v187
    %v190 = vshrl.u32 %v172, %v188
    %v191 = vor.u32 %v189, %v190
    %v192 = vsub.s32 4294967266, %v187
    %v193 = vadd.s32 %v192, 127
    %v194 = vshll.u32 %v193, 23
    %v195 = vor.u32 4788187, %v194
    %v196 = vand.u32 2147483647, %v195
    %v198 = vcvt.s32.f32 %v191
    %v199 = vmul.f32 %v198, %v196
    %v200 = vxor.u32 %v199, 2147483648
    %v201 = vsel %vm80, %v200, %v199
    %v202 = vsub.s32 4, %v178
    %v203 = vsel %vm80, %v202, %v178
    %v204 = vsel %vm79, %v75, %v201
    %v205 = vsel %vm79, 0, %v203
    %v206 = vmul.f32 %v204, %v204
    %v207 = vmul.f32 %v206, -0.001358992
    %v208 = vadd.f32 %v207, 0.041655596
    %v209 = vmul.f32 %v206, %v208
    %v210 = vadd.f32 %v209, -0.4999988
    %v211 = vmul.f32 %v206, %v210
    %v212 = vadd.f32 1.0, %v211
    %v213 = vmul.f32 %v204, %v204
    %v214 = vmul.f32 %v213, -0.00019511016
    %v215 = vadd.f32 %v214, 0.008332121
    %v216 = vmul.f32 %v213, %v215
    %v217 = vadd.f32 %v216, -0.16666654
    %v218 = vmul.f32 %v213, %v217
    %v219 = vadd.f32 %v218, 1.0
    %v220 = vmul.f32 %v219, %v204
    %vm221 = vweird.f32 %v75
    %v222 = vadd.s32 %v205, 3
    %v223 = vand.u32 %v222, 3
    %vm224 = vcmp.lt.s32.totalorder %v223, 2
    %vm225 = vcmp.eq.s32.totalorder %v223, 0
    %v226 = vxor.u32 %v220, 2147483648
    %v227 = vsel %vm225, %v212, %v226
    %vm228 = vcmp.eq.s32.totalorder %v223, 2
    %v229 = vxor.u32 %v212, 2147483648
    %v230 = vsel %vm228, %v229, %v220
    %v231 = vsel %vm224, %v227, %v230
    %v232 = vsel %vm221, nan, %v231
    %v233 = vand.u32 2147483647, %v75
    %vm234 = vcmp.le.f32.partialorder %v233, 0.7853982
    %vm235 = vcmp.lt.s32.totalorder %v75, 0
    %v236 = vand.u32 %v75, 2139095040
    %v237 = vshrl.u32 %v236, 23
    %v238 = vsub.s32 %v237, 127
    %v239 = vand.u32 2147483647, %v75
    %v240 = vand.u32 %v239, 8388607
    %v241 = vor.u32 %v240, 8388608
    %v242 = vsub.s32 0, %v241
    %v243 = vadd.s32 %v238, 1
    %vm244 = vcmp.gt.s32.totalorder %v243, 0
    %v245 = vsel %vm244, %v243, 0
    %v246 = vshrl.u32 %v245, 5
    %v247 = vand.u32 %v245, 31
    %v248 = vsub.s32 32, %v247
    %v249 = vshrl.u32 683565275, %v248
    %v250 = vshll.u32 683565275, %v247
    %v251 = vshrl.u32 2475754826, %v248
    %v252 = vor.u32 %v250, %v251
    %v253 = vshll.u32 2475754826, %v247
    %v254 = vshrl.u32 2131351028, %v248
    %v255 = vor.u32 %v253, %v254
    %v256 = vshll.u32 2131351028, %v247
    %v257 = vshrl.u32 2102212464, %v248
    %v258 = vor.u32 %v256, %v257
    %v259 = vshll.u32 2102212464, %v247
    %v260 = vshrl.u32 920167782, %v248
    %v261 = vor.u32 %v259, %v260
    %v262 = vshll.u32 920167782, %v247
    %v263 = vshrl.u32 1326507024, %v248
    %v264 = vor.u32 %v262, %v263
    %vm265 = vcmp.lt.s32.totalorder %v246, 1
    %vm266 = vcmp.lt.s32.totalorder %v246, 2
    %vm267 = vcmp.lt.s32.totalorder %v246, 3
    %vm268 = vcmp.lt.s32.totalorder %v246, 4
    %v269 = vsel %vm265, %v249, %v252
    %v270 = vsel %vm268, %v258, 2102212464
    %v271 = vsel %vm267, %v255, %v270
    %v272 = vsel %vm266, %v269, %v271
    %v273 = vsel %vm265, %v252, %v255
    %v274 = vsel %vm268, %v261, 920167782
    %v275 = vsel %vm267, %v258, %v274
    %v276 = vsel %vm266, %v273, %v275
    %v277 = vsel %vm265, %v255, %v258
    %v278 = vsel %vm268, %v264, 1326507024
    %v279 = vsel %vm267, %v261, %v278
    %v280 = vsel %vm266, %v277, %v279
    %v281 = vshll.u32 %v241, 8
    %v282 = vand.u32 %v281, 65535
    %v283 = vshrl.u32 %v281, 16
    %v284 = vand.u32 %v280, 65535
    %v285 = vshrl.u32 %v280, 16
    %v286 = vmul.u32 %v282, %v284
    %v287 = vmul.u32 %v282, %v285
    %v288 = vmul.u32 %v283, %v284
    %v289 = vmul.u32 %v283, %v285
    %v290 = vshll.u32 %v287, 16
    %v291 = vshrl.u32 %v287, 16
    %v292 = vshll.u32 %v288, 16
    %v293 = vshrl.u32 %v288, 16
    %vm294 = vc.u32 %v286, %v290
    %v295 = vsel %vm294, 1, 0
    %v296 = vadd.s32 %v286, %v290
    %v297 = vadd.s32 %v289, %v295
    %vm298 = vc.u32 %v296, %v292
    %v299 = vsel %vm298, 1, 0
    %v300 = vadd.s32 %v296, %v292
    %v301 = vadd.s32 %v297, %v299
    %v302 = vadd.s32 %v301, %v291
    %v303 = vadd.s32 %v302, %v293
    %v304 = vand.u32 %v281, 65535
    %v305 = vshrl.u32 %v281, 16
    %v306 = vand.u32 %v276, 65535
    %v307 = vshrl.u32 %v276, 16
    %v308 = vmul.u32 %v304, %v306
    %v309 = vmul.u32 %v304, %v307
    %v310 = vmul.u32 %v305, %v306
    %v311 = vmul.u32 %v305, %v307
    %v312 = vshll.u32 %v309, 16
    %v313 = vshrl.u32 %v309, 16
    %v314 = vshll.u32 %v310, 16
    %v315 = vshrl.u32 %v310, 16
    %vm316 = vc.u32 %v308, %v312
    %v317 = vsel %vm316, 1, 0
    %v318 = vadd.s32 %v308, %v312
    %v319 = vadd.s32 %v311, %v317
    %vm320 = vc.u32 %v318, %v314
    %v321 = vsel %vm320, 1, 0
    %v322 = vadd.s32 %v318, %v314
    %v323 = vadd.s32 %v319, %v321
    %v324 = vadd.s32 %v323, %v313
    %v325 = vadd.s32 %v324, %v315
    %v326 = vmul.u32 %v281, %v272
    %v327 = vadd.s32 %v303, %v322
    %vm328 = vc.u32 %v303, %v322
    %v329 = vadd.s32 %v325, 1
    %v330 = vsel %vm328, %v329, %v325
    %v331 = vadd.s32 %v326, %v330
    %v332 = vadd.s32 %v331, 536870912
    %v333 = vshrl.u32 %v332, 30
    %v334 = vshll.u32 %v333, 30
    %v335 = vsub.s32 %v331, %v334
    %vm336 = vcmp.lt.s32.totalorder %v335, 0
    %v337 = vsub.s32 0, %v335
    %v338 = vsel %vm336, %v337, %v335
    %v339 = vclz %v338
    %v340 = vsub.s32 %v339, 2
    %vm341 = vcmp.gt.s32.totalorder 0, %v340
    %v342 = vsel %vm341, 0, %v340
    %v343 = vsub.s32 32, %v342
    %v344 = vshll.u32 %v335, %v342
    %v345 = vshrl.u32 %v327, %v343
    %v346 = vor.u32 %v344, %v345
    %v347 = vsub.s32 4294967266, %v342
    %v348 = vadd.s32 %v347, 127
    %v349 = vshll.u32 %v348, 23
    %v350 = vor.u32 4788187, %v349
    %v351 = vand.u32 2147483647, %v350
    %v353 = vcvt.s32.f32 %v346
    %v354 = vmul.f32 %v353, %v351
    %v355 = vxor.u32 %v354, 2147483648
    %v356 = vsel %vm235, %v355, %v354
    %v357 = vsub.s32 4, %v333
    %v358 = vsel %vm235, %v357, %v333
    %v359 = vsel %vm234, %v75, %v356
    %v360 = vsel %vm234, 0, %v358
    %v361 = vmul.f32 %v359, %v359
    %v362 = vmul.f32 %v361, -0.001358992
    %v363 = vadd.f32 %v362, 0.041655596
    %v364 = vmul.f32 %v361, %v363
    %v365 = vadd.f32 %v364, -0.4999988
    %v366 = vmul.f32 %v361, %v365
    %v367 = vadd.f32 1.0, %v366
    %v368 = vmul.f32 %v359, %v359
    %v369 = vmul.f32 %v368, -0.00019511016
    %v370 = vadd.f32 %v369, 0.008332121
    %v371 = vmul.f32 %v368, %v370
    %v372 = vadd.f32 %v371, -0.16666654
    %v373 = vmul.f32 %v368, %v372
    %v374 = vadd.f32 %v373, 1.0
    %v375 = vmul.f32 %v374, %v359
    %vm376 = vweird.f32 %v75
    %v377 = vand.u32 %v360, 3
    %vm378 = vcmp.lt.s32.totalorder %v377, 2
    %vm379 = vcmp.eq.s32.totalorder %v377, 0
    %v380 = vxor.u32 %v375, 2147483648
    %v381 = vsel %vm379, %v367, %v380
    %vm382 = vcmp.eq.s32.totalorder %v377, 2
    %v383 = vxor.u32 %v367, 2147483648
    %v384 = vsel %vm382, %v383, %v375
    %v385 = vsel %vm378, %v381, %v384
    %v386 = vsel %vm376, nan, %v385
    %v387 = vsel %vm77, 1, 0
    %v388 = vperm.slane %v387, 0
    %vm389 = vcmp.eq.s32.totalorder %v388, 1
    %v390 = vsel %vm389, %v232, %v386
    %391 = vst [vmem:[#allocation7] sm:$0x3] %v390
    // Predicated region
    $region22: #{tpu_custom_call.1} parent=1 // pred_check
      _
    $region23: #{tpu_custom_call.1} parent=1 // pred_check_branch
      %393 = sbr.rel (0) target = $region25
    $region24: #{tpu_custom_call.1} parent=1 // pred_region
      %395 = vsyncadd [#allocation4], 0
      %s397 = sshll.u32 [#allocation7], 4
      %s398 = int_to_ptr.vmem [resolvable:$true] %s397
      %s399 = sshll.u32 %s3, 4
      %s400 = int_to_ptr.hbm [resolvable:$true] %s399
      %402 = dma.vmem_to_hbm [thread:$0]  %s398, 32, %s400, [#allocation4]
    $region25: #{tpu_custom_call.1} parent=1 // pred_fallthru
      _
    // Predicated region
    $region26: #{tpu_custom_call.1} parent=1 // pred_check
      _
    $region27: #{tpu_custom_call.1} parent=1 // pred_check_branch
      %404 = sbr.rel (0) target = $region29
    $region28: #{tpu_custom_call.1} parent=1 // pred_region
      %406 = dma.done [#allocation4], 32
    $region29: #{tpu_custom_call.1} parent=1 // pred_fallthru
      _
    %407 = vsyncpa [#allocation3], 1
    %408 = vsyncpa [#allocation6], 1
    %409 = vsyncpa [#allocation4], 1

</llo_original>
